<compile_context>
chip_gen: v7x
topology: tpu7x:2x2x1
jax: 0.10.0
libtpu: 0.0.40
codegen_flags: <defaults>
</compile_context>

<pallas_src>
import functools

import jax
import jax.numpy as jnp
from jax.experimental import pallas as pl
from jax.experimental.pallas import tpu as pltpu

_LANES = 128
_MAX_SUBLANES_PER_TILE = 64          # 64 x 128 = 8192 points per grid step


def _auc_kernel(payload_ref, out_ref, *, step, start_at, inv_dt):
    # payload_ref: (8, sub, 128) — rows 0-2: y_pr xyz, 3-5: points_gt xyz,
    #                              6: gt_mask (0/1), 7: valid (0 for padding).
    # out_ref:     (1, 1, 128) int32 — per-tile hit count, lane-broadcast.
    prx = payload_ref[0].astype(jnp.float32)
    pry = payload_ref[1].astype(jnp.float32)
    prz = payload_ref[2].astype(jnp.float32)
    m = payload_ref[6].astype(jnp.float32)
    gtx = payload_ref[3].astype(jnp.float32) * m    # PyTorch: points_gt[~gt_mask] = 0
    gty = payload_ref[4].astype(jnp.float32) * m
    gtz = payload_ref[5].astype(jnp.float32) * m
    valid = payload_ref[7].astype(jnp.float32)

    dx = gtx - prx
    dy = gty - pry
    dz = gtz - prz
    dist = jnp.sqrt(dx * dx + dy * dy + dz * dz)    # EUP sqrt (free slot)

    # #{ t_i = start_at + i*dt, i in [0, step) : dist < t_i }
    #   = clip((step - 1) - floor((dist - start_at) / dt), 0, step)
    q = (dist - start_at) * inv_dt
    hits = jnp.clip(jnp.float32(step - 1) - jnp.floor(q), 0.0, jnp.float32(step))
    hits = hits * valid                              # padded points contribute 0

    # Per-tile partial stays integral (<= step * 8192 << 2^31); one XLU reduce
    # per 8192-point tile, then a single lane-dense store.
    tile_hits = jnp.sum(hits.astype(jnp.int32))
    out_ref[...] = jnp.broadcast_to(tile_hits, out_ref.shape)


def auc_metric(y_pr, points_gt, gt_mask=None, *, start_at=0.0, end_at=0.5, step=30):
    """AUC of PCK.  y_pr, points_gt: (B, N, 3).  gt_mask: optional (B, N) bool."""
    B, N, C = y_pr.shape
    assert C == 3 and points_gt.shape == (B, N, 3)
    assert step >= 2 and end_at > start_at
    P = B * N

    # bf16 inputs stay bf16 in HBM; everything else goes through f32.
    in_dtype = jnp.result_type(y_pr.dtype, points_gt.dtype)
    payload_dtype = jnp.bfloat16 if in_dtype == jnp.bfloat16 else jnp.float32

    pr = y_pr.reshape(P, 3).astype(payload_dtype)
    gt = points_gt.reshape(P, 3).astype(payload_dtype)
    if gt_mask is None:
        m = jnp.ones((P, 1), payload_dtype)
    else:
        m = gt_mask.reshape(P, 1).astype(payload_dtype)
    valid = jnp.ones((P, 1), payload_dtype)

    fields = jnp.concatenate([pr, gt, m, valid], axis=1)          # (P, 8)

    # Tile the point axis: up to 64 sublane-rows x 128 lanes = 8192 pts/step.
    rows = pl.cdiv(P, _LANES)
    sub = min(_MAX_SUBLANES_PER_TILE, rows)
    tile_pts = sub * _LANES
    num_tiles = pl.cdiv(P, tile_pts)
    p_pad = num_tiles * tile_pts

    fields = jnp.pad(fields, ((0, p_pad - P), (0, 0)))            # pad: valid = 0
    payload = fields.T.reshape(8, num_tiles * sub, _LANES)        # lane-dense

    kernel = functools.partial(
        _auc_kernel,
        step=int(step),
        start_at=float(start_at),
        inv_dt=float((step - 1) / (end_at - start_at)),
    )

    partials = pl.pallas_call(
        kernel,
        out_shape=jax.ShapeDtypeStruct((num_tiles, 1, _LANES), jnp.int32),
        grid=(num_tiles,),
        in_specs=[pl.BlockSpec((8, sub, _LANES), lambda i: (0, i, 0))],
        out_specs=pl.BlockSpec((1, 1, _LANES), lambda i: (i, 0, 0)),
        compiler_params=pltpu.CompilerParams(
            dimension_semantics=("parallel",),   # v7x: both TCs split the point axis
        ),
    )(payload)

    # Tiny final reduction outside the kernel (keeps the grid axis parallel).
    # Per-tile partials are exact int32; the f32 sum is exact up to 2^24 hits
    # (~0.5M points) and only has relative rounding beyond — fine for a metric.
    hits = jnp.sum(partials[:, 0, 0].astype(jnp.float32))
    return hits / jnp.float32(step * P)


def _auc_reference(y_pr, points_gt, gt_mask=None, *, start_at=0.0, end_at=0.5, step=30):
    y_pr = y_pr.astype(jnp.float32)
    pg = points_gt.astype(jnp.float32)
    if gt_mask is not None:
        pg = jnp.where(gt_mask[..., None], pg, 0.0)
    dist = jnp.linalg.norm(pg - y_pr, axis=-1)                    # (B, N)
    thr = jnp.linspace(start_at, end_at, step).astype(jnp.float32)
    pck = jnp.mean((dist[None] < thr[:, None, None]).astype(jnp.float32), axis=(1, 2))
    return jnp.mean(pck)


if __name__ == "__main__":
    key = jax.random.PRNGKey(0)
    k1, k2, k3, k4, k5, k6 = jax.random.split(key, 6)

    STEP = 30

    # Small case (single 128-point tile, padded from 16 real points).
    B, N = 2, 8
    y_pr = jax.random.normal(k1, (B, N, 3), dtype=jnp.float32) * 0.2
    points_gt = y_pr + jax.random.normal(k2, (B, N, 3), dtype=jnp.float32) * 0.1
    gt_mask = jax.random.uniform(k3, (B, N)) > 0.2

    # Closed-form vs strict '<' can differ only at exact threshold ties; allow a
    # couple of single-flip deviations (each worth 1/(step*P)).
    tol = 2.5 / (STEP * B * N)

    out = jax.block_until_ready(auc_metric(y_pr, points_gt, gt_mask))
    ref = _auc_reference(y_pr, points_gt, gt_mask)
    assert jnp.abs(out - ref) <= tol, (out, ref)

    out2 = jax.block_until_ready(auc_metric(y_pr, points_gt))     # gt_mask=None path
    ref2 = _auc_reference(y_pr, points_gt)
    assert jnp.abs(out2 - ref2) <= tol, (out2, ref2)

    # Multi-tile case (P = 12288 -> 2 grid steps of 8192 points, with padding).
    B2, N2 = 3, 4096
    y_pr2 = jax.random.normal(k4, (B2, N2, 3), dtype=jnp.float32) * 0.2
    points_gt2 = y_pr2 + jax.random.normal(k5, (B2, N2, 3), dtype=jnp.float32) * 0.1
    gt_mask2 = jax.random.uniform(k6, (B2, N2)) > 0.2
    tol2 = 2.5 / (STEP * B2 * N2) + 1e-5

    out3 = jax.block_until_ready(auc_metric(y_pr2, points_gt2, gt_mask2))
    ref3 = _auc_reference(y_pr2, points_gt2, gt_mask2)
    assert jnp.abs(out3 - ref3) <= tol2, (out3, ref3)

    print("KERNEL_OK")
</pallas_src>

<mosaic_0001>
module attributes {stable_mosaic.version = 11 : i64} {
  func.func @_auc_kernel(%arg0: i32, %arg1: memref<8x1x128xf32, #tpu.memory_space<vmem>>, %arg2: memref<1x1x128xi32, #tpu.memory_space<vmem>>) attributes {dimension_semantics = [#tpu.dimension_semantics<parallel>], iteration_bounds = array<i64: 1>, scalar_prefetch = 0 : i64, scratch_operands = 0 : i64, tpu.core_type = #tpu.core_type<tc>, window_params = [{transform_indices = @transform_0, window_bounds = array<i64: 8, 1, 128>}, {transform_indices = @transform_1, window_bounds = array<i64: 1, 1, 128>}]} {
    %c0 = arith.constant 0 : index
    %c0_0 = arith.constant 0 : index
    %c0_1 = arith.constant 0 : index
    %0 = vector.load %arg1[%c0, %c0_0, %c0_1] : memref<8x1x128xf32, #tpu.memory_space<vmem>>, vector<1x1x128xf32>
    %1 = vector.shape_cast %0 : vector<1x1x128xf32> to vector<1x128xf32>
    %c1 = arith.constant 1 : index
    %c0_2 = arith.constant 0 : index
    %c0_3 = arith.constant 0 : index
    %2 = vector.load %arg1[%c1, %c0_2, %c0_3] : memref<8x1x128xf32, #tpu.memory_space<vmem>>, vector<1x1x128xf32>
    %3 = vector.shape_cast %2 : vector<1x1x128xf32> to vector<1x128xf32>
    %c2 = arith.constant 2 : index
    %c0_4 = arith.constant 0 : index
    %c0_5 = arith.constant 0 : index
    %4 = vector.load %arg1[%c2, %c0_4, %c0_5] : memref<8x1x128xf32, #tpu.memory_space<vmem>>, vector<1x1x128xf32>
    %5 = vector.shape_cast %4 : vector<1x1x128xf32> to vector<1x128xf32>
    %c6 = arith.constant 6 : index
    %c0_6 = arith.constant 0 : index
    %c0_7 = arith.constant 0 : index
    %6 = vector.load %arg1[%c6, %c0_6, %c0_7] : memref<8x1x128xf32, #tpu.memory_space<vmem>>, vector<1x1x128xf32>
    %7 = vector.shape_cast %6 : vector<1x1x128xf32> to vector<1x128xf32>
    %c3 = arith.constant 3 : index
    %c0_8 = arith.constant 0 : index
    %c0_9 = arith.constant 0 : index
    %8 = vector.load %arg1[%c3, %c0_8, %c0_9] : memref<8x1x128xf32, #tpu.memory_space<vmem>>, vector<1x1x128xf32>
    %9 = vector.shape_cast %8 : vector<1x1x128xf32> to vector<1x128xf32>
    %10 = arith.mulf %9, %7 : vector<1x128xf32>
    %c4 = arith.constant 4 : index
    %c0_10 = arith.constant 0 : index
    %c0_11 = arith.constant 0 : index
    %11 = vector.load %arg1[%c4, %c0_10, %c0_11] : memref<8x1x128xf32, #tpu.memory_space<vmem>>, vector<1x1x128xf32>
    %12 = vector.shape_cast %11 : vector<1x1x128xf32> to vector<1x128xf32>
    %13 = arith.mulf %12, %7 : vector<1x128xf32>
    %c5 = arith.constant 5 : index
    %c0_12 = arith.constant 0 : index
    %c0_13 = arith.constant 0 : index
    %14 = vector.load %arg1[%c5, %c0_12, %c0_13] : memref<8x1x128xf32, #tpu.memory_space<vmem>>, vector<1x1x128xf32>
    %15 = vector.shape_cast %14 : vector<1x1x128xf32> to vector<1x128xf32>
    %16 = arith.mulf %15, %7 : vector<1x128xf32>
    %c7 = arith.constant 7 : index
    %c0_14 = arith.constant 0 : index
    %c0_15 = arith.constant 0 : index
    %17 = vector.load %arg1[%c7, %c0_14, %c0_15] : memref<8x1x128xf32, #tpu.memory_space<vmem>>, vector<1x1x128xf32>
    %18 = vector.shape_cast %17 : vector<1x1x128xf32> to vector<1x128xf32>
    %19 = arith.subf %10, %1 : vector<1x128xf32>
    %20 = arith.subf %13, %3 : vector<1x128xf32>
    %21 = arith.subf %16, %5 : vector<1x128xf32>
    %22 = arith.mulf %19, %19 : vector<1x128xf32>
    %23 = arith.mulf %20, %20 : vector<1x128xf32>
    %24 = arith.addf %22, %23 : vector<1x128xf32>
    %25 = arith.mulf %21, %21 : vector<1x128xf32>
    %26 = arith.addf %24, %25 : vector<1x128xf32>
    %27 = math.sqrt %26 : vector<1x128xf32>
    %cst = arith.constant 0.000000e+00 : f32
    %28 = vector.broadcast %cst : f32 to vector<1x128xf32>
    %29 = arith.subf %27, %28 : vector<1x128xf32>
    %cst_16 = arith.constant 5.800000e+01 : f32
    %30 = vector.broadcast %cst_16 : f32 to vector<1x128xf32>
    %31 = arith.mulf %29, %30 : vector<1x128xf32>
    %32 = math.floor %31 : vector<1x128xf32>
    %cst_17 = arith.constant 2.900000e+01 : f32
    %33 = vector.broadcast %cst_17 : f32 to vector<1x128xf32>
    %34 = arith.subf %33, %32 : vector<1x128xf32>
    %cst_18 = arith.constant 0.000000e+00 : f32
    %cst_19 = arith.constant 3.000000e+01 : f32
    %35 = vector.broadcast %cst_18 : f32 to vector<1x128xf32>
    %36 = arith.maximumf %35, %34 : vector<1x128xf32>
    %37 = vector.broadcast %cst_19 : f32 to vector<1x128xf32>
    %38 = arith.minimumf %37, %36 : vector<1x128xf32>
    %39 = arith.mulf %38, %18 : vector<1x128xf32>
    %40 = arith.fptosi %39 : vector<1x128xf32> to vector<1x128xi32>
    %41 = vector.shape_cast %40 : vector<1x128xi32> to vector<1x1x128xi32>
    %cst_20 = arith.constant dense<0> : vector<1xi32>
    %42 = vector.multi_reduction <add>, %41, %cst_20 [1, 2] : vector<1x1x128xi32> to vector<1xi32>
    %43 = vector.shape_cast %42 : vector<1xi32> to vector<1x1x1xi32>
    %44 = vector.extract %43[0, 0, 0] : i32 from vector<1x1x1xi32>
    %45 = vector.broadcast %44 : i32 to vector<1x1x128xi32>
    %c0_21 = arith.constant 0 : index
    %c0_22 = arith.constant 0 : index
    %c0_23 = arith.constant 0 : index
    %46 = vector.load %arg2[%c0_21, %c0_22, %c0_23] : memref<1x1x128xi32, #tpu.memory_space<vmem>>, vector<1x1x128xi32>
    tpu.vector_store %arg2[%c0_21, %c0_22, %c0_23], %45 {strides = array<i32>} : memref<1x1x128xi32, #tpu.memory_space<vmem>>, vector<1x1x128xi32>,
    return
  }
  func.func @transform_0(%arg0: i32) -> (i32, i32, i32) {
    %c0_i32 = arith.constant 0 : i32
    %c0_i32_0 = arith.constant 0 : i32
    %c0_i32_1 = arith.constant 0 : i32
    return %c0_i32, %arg0, %c0_i32_0 : i32, i32, i32
  }
  func.func @transform_1(%arg0: i32) -> (i32, i32, i32) {
    %c0_i32 = arith.constant 0 : i32
    %c0_i32_0 = arith.constant 0 : i32
    %c0_i32_1 = arith.constant 0 : i32
    return %arg0, %c0_i32, %c0_i32_0 : i32, i32, i32
  }
}

</mosaic_0001>

<llo_original>
// kernel: tpu_custom_call.1
$region0: #{tpu_custom_call.1}
  #allocation0 [shape = 'u32[]', space=smem, size = 0x4, offset = 0x4, fixed_abs, tag = 'smem constant byte address 0x4 - core index']
  #allocation1 [shape = 'u32[144,128]{1,0:T(1,128)}', space=vmem, size = 0x12000, scoped, tag = 'internal scratch']
  %s0 = inlined_call_operand.hbm [shape: f32[8,1,128], index: 0, kind: input, shape index: {}]
  %s1 = inlined_call_operand.hbm [shape: s32[1,1,128], index: 1, kind: output, shape index: {}]
  %s2 = sld [smem:[#allocation0]]
  $region18: #{tpu_custom_call.1} parent=0
    _
  %s4 = ssub.s32 1, %s2
  %s5 = scalar_select 0, %s4, %s2
  $region1: #{tpu_custom_call.1} parent=0
    #allocation2 [shape = 'u8[4096]{0}', space=vmem, size = 0x1000, scoped, tag = 'input window, operand 0, single buffered']
    #allocation3 [shape = 's32[1]{0}', space=sflag, size = 0x4, scoped, tag = 'scoped memory for tpu_custom_call.1']
    #allocation4 [shape = 's32[1]{0}', space=sflag, size = 0x4, scoped, tag = 'scoped memory for tpu_custom_call.1']
    #allocation5 [shape = 'u8[512]{0}', space=vmem, size = 0x400, scoped, tag = 'output window, operand 0, single buffered']
    %6 = vsyncpa [#allocation3], 0
    %7 = vsyncpa [#allocation4], 0
    // Predicated region
    $region2: #{tpu_custom_call.1} parent=1 // pred_check
      _
    $region3: #{tpu_custom_call.1} parent=1 // pred_check_branch
      %9 = sbr.rel (0) target = $region5
    $region4: #{tpu_custom_call.1} parent=1 // pred_region
      %s11 = ssub.s32 128, 128
      %12 = vsyncadd [#allocation3], %s11
      %s13 = sshll.u32 [#allocation2], 4
      %s14 = int_to_ptr.vmem [resolvable:$true] %s13
      %19 = dma.hbm_to_vmem [thread:$0]  %s0, 128, %s14, [#allocation3], 16, 16, 1
    $region5: #{tpu_custom_call.1} parent=1 // pred_fallthru
      _
    // Predicated region
    $region6: #{tpu_custom_call.1} parent=1 // pred_check
      _
    $region7: #{tpu_custom_call.1} parent=1 // pred_check_branch
      %21 = sbr.rel (0) target = $region9
    $region8: #{tpu_custom_call.1} parent=1 // pred_region
      %22 = dma.done [#allocation3], 128
    $region9: #{tpu_custom_call.1} parent=1 // pred_fallthru
      _
    %v23 = vld [vmem:[#allocation2] sm:$0x1]
    %s24 = scalar_lea.vmem [#allocation2], 1
    %v25 = vld [vmem:[%s24] sm:$0x1]
    %s26 = scalar_lea.vmem [#allocation2], 2
    %v27 = vld [vmem:[%s26] sm:$0x1]
    %s28 = scalar_lea.vmem [#allocation2], 6
    %v29 = vld [vmem:[%s28] sm:$0x1]
    %s30 = scalar_lea.vmem [#allocation2], 3
    %v31 = vld [vmem:[%s30] sm:$0x1]
    %v32 = vmul.f32 %v31, %v29
    %s33 = scalar_lea.vmem [#allocation2], 4
    %v34 = vld [vmem:[%s33] sm:$0x1]
    %v35 = vmul.f32 %v34, %v29
    %s36 = scalar_lea.vmem [#allocation2], 5
    %v37 = vld [vmem:[%s36] sm:$0x1]
    %v38 = vmul.f32 %v37, %v29
    %s39 = scalar_lea.vmem [#allocation2], 7
    %v40 = vld [vmem:[%s39] sm:$0x1]
    %v41 = vsub.f32 %v32, %v23
    %v42 = vsub.f32 %v35, %v25
    %v43 = vsub.f32 %v38, %v27
    %v44 = vmul.f32 %v41, %v41
    %v45 = vmul.f32 %v42, %v42
    %v46 = vadd.f32 %v44, %v45
    %v47 = vmul.f32 %v43, %v43
    %v48 = vadd.f32 %v46, %v47
    %v49 = vrsqrt.pop %v48
    %v50 = vmul.f32 %v48, %v49
    %vm51 = vcmp.eq.f32.partialorder %v48, inf
    %v52 = vsel %vm51, %v48, %v50
    %vm53 = vcmp.eq.f32.partialorder %v48, 0.0
    %v54 = vand.u32 %v48, 2147483648
    %v55 = vsel %vm53, %v54, %v52
    %v56 = vmul.f32 %v55, 58.0
    %v57 = vfloor.f32 %v56
    %v58 = vsub.f32 29.0, %v57
    %v59 = vmax.f32 %v58, 0.0
    %v60 = vmin.f32 %v59, 30.0
    %v61 = vmul.f32 %v60, %v40
    %v62 = vcvt.f32.s32.to.zero.pseudo %v61
    %vm63 = vcmask 1040384
    %v64 = vsel %vm63, %v62, 0
    %v65 = vand.u32 %v64, 65535
    %v66 = vshrl.u32 %v64, 16
    %v67 = vcvt.s32.f32 %v65
    %v68 = vcvt.s32.f32 %v66
    %69 = vadd.xlane.f32.xlu0 %v67
    %v70 = vpop.xlane.xlu0 %69
    %71 = vadd.xlane.f32.xlu0 %v68
    %v72 = vpop.xlane.xlu0 %71
    %v73 = vcvt.f32.s32 %v70
    %v74 = vcvt.f32.s32 %v72
    %v75 = vshll.u32 %v74, 16
    %v76 = vadd.s32 %v75, %v73
    %v77 = vrot.slane %v76, 4
    %v78 = vadd.s32 %v76, %v77
    %v79 = vrot.slane %v78, 2
    %v80 = vadd.s32 %v78, %v79
    %v81 = vrot.slane %v80, 1
    %v82 = vadd.s32 %v80, %v81
    %s83 = vtos %v82
    %v84 = vstv %s83
    %85 = vst [vmem:[#allocation5] sm:$0x1] %v84
    // Predicated region
    $region10: #{tpu_custom_call.1} parent=1 // pred_check
      _
    $region11: #{tpu_custom_call.1} parent=1 // pred_check_branch
      %87 = sbr.rel (0) target = $region13
    $region12: #{tpu_custom_call.1} parent=1 // pred_region
      %s89 = ssub.s32 16, 16
      %90 = vsyncadd [#allocation4], %s89
      %s92 = sshll.u32 [#allocation5], 4
      %s93 = int_to_ptr.vmem [resolvable:$true] %s92
      %95 = dma.vmem_to_hbm [thread:$0]  %s93, 16, %s1, [#allocation4]
    $region13: #{tpu_custom_call.1} parent=1 // pred_fallthru
      _
    // Predicated region
    $region14: #{tpu_custom_call.1} parent=1 // pred_check
      _
    $region15: #{tpu_custom_call.1} parent=1 // pred_check_branch
      %97 = sbr.rel (0) target = $region17
    $region16: #{tpu_custom_call.1} parent=1 // pred_region
      %98 = dma.done [#allocation4], 16
    $region17: #{tpu_custom_call.1} parent=1 // pred_fallthru
      _
    %99 = vsyncpa [#allocation3], 1
    %100 = vsyncpa [#allocation4], 1

</llo_original>
